<compile_context>
chip_gen: v6e
topology: v6e:2x2x1
jax: 0.10.0
libtpu: 0.0.40
codegen_flags: <defaults>
</compile_context>

<pallas_src>
import functools
import math

import jax
import jax.numpy as jnp
from jax.experimental import pallas as pl
from jax.experimental.pallas import tpu as pltpu


_TC_SPLIT_MIN = 256  # split the batch into >=2 grid steps once M >= 2*this


def _round_up(x, m):
    return (x + m - 1) // m * m


# ----------------------------------------------------------------------------
# Fused MLP kernel: one (TILE_M, S) batch tile -> (TILE_M, H) output tile.
# ----------------------------------------------------------------------------
def _fullynet_kernel(x_ref, w1_ref, b1_ref, w2_ref, b2_ref, o_ref, *, last):
    # In-kernel bf16 cast: x is read from HBM exactly once in its native dtype
    # (no wrapper-side astype round trip); the cast is free VPU filler under
    # the memory-bound regime.
    x = x_ref[...].astype(jnp.bfloat16)

    # fc1 + ReLU  (bf16 operands on the MXU, f32 accumulate)
    h = jnp.dot(x, w1_ref[...], preferred_element_type=jnp.float32)
    h = jnp.maximum(h + b1_ref[...], 0.0)

    # fc2 + ReLU
    h = jnp.dot(h.astype(w2_ref.dtype), w2_ref[...],
                preferred_element_type=jnp.float32)
    h = jnp.maximum(h + b2_ref[...], 0.0)

    # last_active: 'value'  -> ReLU (identity on an already-ReLUed tensor),
    #              'policy' -> softmax over the last dim (whole H in one block,
    #              so the row max/sum are exact).
    if last == "softmax":
        m = jnp.max(h, axis=-1, keepdims=True)
        e = jnp.exp(h - m)
        h = e * pl.reciprocal(jnp.sum(e, axis=-1, keepdims=True), approx=True)

    o_ref[...] = h.astype(o_ref.dtype)


# ----------------------------------------------------------------------------
# Batch-tile selection.
# ----------------------------------------------------------------------------
def _choose_tile_m(M, tile_m):
    """Pick the batch tile.

    * tiny/small batches: the whole batch in one block (block dim == full
      array dim is always layout-legal; no padding, single grid step),
    * mid-size batches: split into >= 2 grid steps so 'parallel' actually
      shards across the two v7x TensorCores,
    * large batches: cap at tile_m (1024 rows ~ 85%+ of HBM roofline while
      staying tiny relative to every generation's VMEM limit).
    """
    if M < 2 * _TC_SPLIT_MIN:
        return M
    if M <= tile_m:
        return _round_up(pl.cdiv(M, 2), 16)
    return tile_m


# ----------------------------------------------------------------------------
# Wrapper: tile the batch dimension and call the fused kernel once.
# ----------------------------------------------------------------------------
def fullynet_forward(params, x, net_type, tile_m=1024, out_dtype=jnp.bfloat16):
    if net_type == "value":
        last = "relu"
    elif net_type == "policy":
        last = "softmax"
    else:
        raise ValueError("Undefined net type")

    M, S = x.shape
    H = params["w2"].shape[1]

    tm = _choose_tile_m(M, tile_m)
    grid_m = pl.cdiv(M, tm)  # ragged last tile: OOB reads masked, writes dropped

    return pl.pallas_call(
        functools.partial(_fullynet_kernel, last=last),
        out_shape=jax.ShapeDtypeStruct((M, H), out_dtype),
        grid=(grid_m,),
        in_specs=[
            pl.BlockSpec((tm, S), lambda i: (i, 0)),   # batch tile (pipelined)
            pl.BlockSpec((S, H), lambda i: (0, 0)),    # w1 (VMEM-resident)
            pl.BlockSpec((1, H), lambda i: (0, 0)),    # b1
            pl.BlockSpec((H, H), lambda i: (0, 0)),    # w2 (VMEM-resident)
            pl.BlockSpec((1, H), lambda i: (0, 0)),    # b2
        ],
        out_specs=pl.BlockSpec((tm, H), lambda i: (i, 0)),
        compiler_params=pltpu.CompilerParams(
            dimension_semantics=("parallel",)),        # shard M across TCs
    )(x, params["w1"], params["b1"], params["w2"], params["b2"])


# ----------------------------------------------------------------------------
# Parameters (torch-Linear-like uniform init), plus one-time kernel prep.
# ----------------------------------------------------------------------------
def init_params(key, state_space, action_space, hidden_size=256):
    ks = jax.random.split(key, 6)

    def u(k, shape, fan_in):
        bound = 1.0 / math.sqrt(fan_in)
        return jax.random.uniform(k, shape, jnp.float32, -bound, bound)

    # Weights stored as (in, out) == torch weight (out, in) transposed.
    return {
        "w1": u(ks[0], (state_space, hidden_size), state_space),
        "b1": u(ks[1], (hidden_size,), state_space),
        "w2": u(ks[2], (hidden_size, hidden_size), hidden_size),
        "b2": u(ks[3], (hidden_size,), hidden_size),
        # fc3 exists in the reference __init__ but is never used in forward().
        "w3": u(ks[4], (hidden_size, action_space), hidden_size),
        "b3": u(ks[5], (action_space,), hidden_size),
    }


def prep_params(p):
    """One-time prep: bf16 weights for the MXU, (1, H) f32 biases."""
    return {
        "w1": p["w1"].astype(jnp.bfloat16),
        "b1": p["b1"].reshape(1, -1).astype(jnp.float32),
        "w2": p["w2"].astype(jnp.bfloat16),
        "b2": p["b2"].reshape(1, -1).astype(jnp.float32),
    }


def _ref_forward(p, x, net_type):
    """Pure-JAX f32 reference mirroring the PyTorch forward()."""
    h = jax.nn.relu(x @ p["w1"] + p["b1"])
    h = jax.nn.relu(h @ p["w2"] + p["b2"])
    if net_type == "policy":
        h = jax.nn.softmax(h, axis=-1)
    else:
        h = jax.nn.relu(h)
    return h


if __name__ == "__main__":
    batch, state_space, action_space, hidden = 2, 16, 6, 256
    key = jax.random.PRNGKey(0)
    k_params, k_x, k_xb = jax.random.split(key, 3)

    params_f32 = init_params(k_params, state_space, action_space, hidden)
    params = prep_params(params_f32)

    # Small-batch inference path: whole batch in one block, single grid step.
    x_small = jax.random.normal(k_x, (batch, state_space), jnp.float32)
    # Mid-size batch: exercises the >=2-step "parallel" grid + ragged last tile.
    x_big = jax.random.normal(k_xb, (528, state_space), jnp.float32)

    for net_type in ("policy", "value"):
        for x in (x_small, x_big):
            out = jax.block_until_ready(fullynet_forward(params, x, net_type))
            ref = _ref_forward(params_f32, x, net_type)
            assert out.shape == (x.shape[0], hidden), out.shape
            out_f32 = out.astype(jnp.float32)
            ok = bool(jnp.allclose(out_f32, ref, atol=2e-2, rtol=2e-2))
            assert ok, (net_type, x.shape, float(jnp.max(jnp.abs(out_f32 - ref))))
            if net_type == "policy":
                # approx reciprocal + bf16 output -> loose tolerance on the sum
                s = jnp.sum(out_f32, axis=-1)
                assert bool(jnp.allclose(s, 1.0, atol=2e-2)), float(
                    jnp.max(jnp.abs(s - 1.0)))
    print("KERNEL_OK")
</pallas_src>

<mosaic_0001>
module attributes {stable_mosaic.version = 11 : i64} {
  func.func @_fullynet_kernel(%arg0: i32, %arg1: memref<2x16xf32, #tpu.memory_space<vmem>>, %arg2: memref<16x256xbf16, #tpu.memory_space<vmem>>, %arg3: memref<1x256xf32, #tpu.memory_space<vmem>>, %arg4: memref<256x256xbf16, #tpu.memory_space<vmem>>, %arg5: memref<1x256xf32, #tpu.memory_space<vmem>>, %arg6: memref<2x256xbf16, #tpu.memory_space<vmem>>) attributes {dimension_semantics = [#tpu.dimension_semantics<parallel>], iteration_bounds = array<i64: 1>, scalar_prefetch = 0 : i64, scratch_operands = 0 : i64, tpu.core_type = #tpu.core_type<tc>, window_params = [{transform_indices = @transform_0, window_bounds = array<i64: 2, 16>}, {pipeline_mode = #tpu.pipeline_mode<synchronous>, transform_indices = @transform_1, window_bounds = array<i64: 16, 256>}, {pipeline_mode = #tpu.pipeline_mode<synchronous>, transform_indices = @transform_2, window_bounds = array<i64: 1, 256>}, {pipeline_mode = #tpu.pipeline_mode<synchronous>, transform_indices = @transform_3, window_bounds = array<i64: 256, 256>}, {pipeline_mode = #tpu.pipeline_mode<synchronous>, transform_indices = @transform_4, window_bounds = array<i64: 1, 256>}, {transform_indices = @transform_5, window_bounds = array<i64: 2, 256>}]} {
    %c0 = arith.constant 0 : index
    %c0_0 = arith.constant 0 : index
    %0 = vector.load %arg1[%c0, %c0_0] : memref<2x16xf32, #tpu.memory_space<vmem>>, vector<2x16xf32>
    %1 = arith.truncf %0 : vector<2x16xf32> to vector<2x16xbf16>
    %c0_1 = arith.constant 0 : index
    %c0_2 = arith.constant 0 : index
    %2 = vector.load %arg2[%c0_1, %c0_2] : memref<16x256xbf16, #tpu.memory_space<vmem>>, vector<16x256xbf16>
    %cst = arith.constant dense<0.000000e+00> : vector<2x256xf32>
    %3 = tpu.matmul %1, %2, %cst {dimension_numbers = #tpu.dot_dimension_numbers<[1], [0], [0], [1], [0, 0, 1, 1], [], []>} : vector<2x16xbf16>, vector<16x256xbf16>, vector<2x256xf32> -> vector<2x256xf32>
    %c0_3 = arith.constant 0 : index
    %c0_4 = arith.constant 0 : index
    %4 = vector.load %arg3[%c0_3, %c0_4] : memref<1x256xf32, #tpu.memory_space<vmem>>, vector<1x256xf32>
    %5 = vector.broadcast %4 : vector<1x256xf32> to vector<2x256xf32>
    %6 = arith.addf %3, %5 : vector<2x256xf32>
    %cst_5 = arith.constant 0.000000e+00 : f32
    %7 = vector.broadcast %cst_5 : f32 to vector<2x256xf32>
    %8 = arith.maximumf %6, %7 : vector<2x256xf32>
    %9 = arith.truncf %8 : vector<2x256xf32> to vector<2x256xbf16>
    %c0_6 = arith.constant 0 : index
    %c0_7 = arith.constant 0 : index
    %10 = vector.load %arg4[%c0_6, %c0_7] : memref<256x256xbf16, #tpu.memory_space<vmem>>, vector<256x256xbf16>
    %cst_8 = arith.constant dense<0.000000e+00> : vector<2x256xf32>
    %11 = tpu.matmul %9, %10, %cst_8 {dimension_numbers = #tpu.dot_dimension_numbers<[1], [0], [0], [1], [0, 0, 1, 1], [], []>} : vector<2x256xbf16>, vector<256x256xbf16>, vector<2x256xf32> -> vector<2x256xf32>
    %c0_9 = arith.constant 0 : index
    %c0_10 = arith.constant 0 : index
    %12 = vector.load %arg5[%c0_9, %c0_10] : memref<1x256xf32, #tpu.memory_space<vmem>>, vector<1x256xf32>
    %13 = vector.broadcast %12 : vector<1x256xf32> to vector<2x256xf32>
    %14 = arith.addf %11, %13 : vector<2x256xf32>
    %cst_11 = arith.constant 0.000000e+00 : f32
    %15 = vector.broadcast %cst_11 : f32 to vector<2x256xf32>
    %16 = arith.maximumf %14, %15 : vector<2x256xf32>
    %cst_12 = arith.constant dense<0xFF800000> : vector<2xf32>
    %17 = vector.multi_reduction <maximumf>, %16, %cst_12 [1] : vector<2x256xf32> to vector<2xf32>
    %18 = vector.shape_cast %17 : vector<2xf32> to vector<2x1xf32>
    %19 = vector.broadcast %18 : vector<2x1xf32> to vector<2x256xf32>
    %20 = arith.subf %16, %19 : vector<2x256xf32>
    %21 = math.exp %20 : vector<2x256xf32>
    %cst_13 = arith.constant dense<0.000000e+00> : vector<2xf32>
    %22 = vector.multi_reduction <add>, %21, %cst_13 [1] : vector<2x256xf32> to vector<2xf32>
    %23 = vector.shape_cast %22 : vector<2xf32> to vector<2x1xf32>
    %24 = tpu.reciprocal %23 {approx = true} : vector<2x1xf32> -> vector<2x1xf32>
    %25 = vector.broadcast %24 : vector<2x1xf32> to vector<2x256xf32>
    %26 = arith.mulf %21, %25 : vector<2x256xf32>
    %27 = arith.truncf %26 : vector<2x256xf32> to vector<2x256xbf16>
    %c0_14 = arith.constant 0 : index
    %c0_15 = arith.constant 0 : index
    %28 = vector.load %arg6[%c0_14, %c0_15] : memref<2x256xbf16, #tpu.memory_space<vmem>>, vector<2x256xbf16>
    tpu.vector_store %arg6[%c0_14, %c0_15], %27 {strides = array<i32>} : memref<2x256xbf16, #tpu.memory_space<vmem>>, vector<2x256xbf16>,
    return
  }
  func.func @transform_0(%arg0: i32) -> (i32, i32) {
    %c0_i32 = arith.constant 0 : i32
    %c0_i32_0 = arith.constant 0 : i32
    return %arg0, %c0_i32 : i32, i32
  }
  func.func @transform_1(%arg0: i32) -> (i32, i32) {
    %c0_i32 = arith.constant 0 : i32
    %c0_i32_0 = arith.constant 0 : i32
    %c0_i32_1 = arith.constant 0 : i32
    return %c0_i32, %c0_i32_0 : i32, i32
  }
  func.func @transform_2(%arg0: i32) -> (i32, i32) {
    %c0_i32 = arith.constant 0 : i32
    %c0_i32_0 = arith.constant 0 : i32
    %c0_i32_1 = arith.constant 0 : i32
    return %c0_i32, %c0_i32_0 : i32, i32
  }
  func.func @transform_3(%arg0: i32) -> (i32, i32) {
    %c0_i32 = arith.constant 0 : i32
    %c0_i32_0 = arith.constant 0 : i32
    %c0_i32_1 = arith.constant 0 : i32
    return %c0_i32, %c0_i32_0 : i32, i32
  }
  func.func @transform_4(%arg0: i32) -> (i32, i32) {
    %c0_i32 = arith.constant 0 : i32
    %c0_i32_0 = arith.constant 0 : i32
    %c0_i32_1 = arith.constant 0 : i32
    return %c0_i32, %c0_i32_0 : i32, i32
  }
  func.func @transform_5(%arg0: i32) -> (i32, i32) {
    %c0_i32 = arith.constant 0 : i32
    %c0_i32_0 = arith.constant 0 : i32
    return %arg0, %c0_i32 : i32, i32
  }
}

</mosaic_0001>

<llo_original>
// kernel: tpu_custom_call.1
$region0: #{tpu_custom_call.1}
  #allocation0 [shape = 'u32[]', space=smem, size = 0x4, offset = 0x4, fixed_abs, tag = 'smem constant byte address 0x4 - core index']
  #allocation1 [shape = 'u32[144,128]{1,0:T(1,128)}', space=vmem, size = 0x12000, scoped, tag = 'internal scratch']
  %s0 = inlined_call_operand.hbm [shape: f32[2,16], index: 0, kind: input, shape index: {}]
  %s1 = inlined_call_operand.hbm [shape: bf16[16,256], index: 1, kind: input, shape index: {}]
  %s2 = inlined_call_operand.vmem [shape: f32[1,256], index: 2, kind: input, shape index: {}]
  %s3 = inlined_call_operand.hbm [shape: bf16[256,256], index: 3, kind: input, shape index: {}]
  %s4 = inlined_call_operand.vmem [shape: f32[1,256], index: 4, kind: input, shape index: {}]
  %s5 = inlined_call_operand.hbm [shape: bf16[2,256], index: 5, kind: output, shape index: {}]
  %s6 = sld [smem:[#allocation0]]
  $region42: #{tpu_custom_call.1} parent=0
    _
  %s8 = ssub.s32 1, %s6
  %s9 = scalar_select 0, %s8, %s6
  $region1: #{tpu_custom_call.1} parent=0
    #allocation2 [shape = 'u8[1024]{0}', space=vmem, size = 0x400, scoped, tag = 'input window, operand 0, single buffered']
    #allocation3 [shape = 's32[1]{0}', space=sflag, size = 0x4, scoped, tag = 'scoped memory for tpu_custom_call.1']
    #allocation4 [shape = 's32[1]{0}', space=sflag, size = 0x4, scoped, tag = 'scoped memory for tpu_custom_call.1']
    #allocation5 [shape = 'u8[8192]{0}', space=vmem, size = 0x2000, scoped, tag = 'input window, operand 1, single buffered']
    #allocation6 [shape = 's32[1]{0}', space=sflag, size = 0x4, scoped, tag = 'scoped memory for tpu_custom_call.1']
    #allocation7 [shape = 'u8[131072]{0}', space=vmem, size = 0x20000, scoped, tag = 'input window, operand 3, single buffered']
    #allocation8 [shape = 'u8[1024]{0}', space=vmem, size = 0x400, scoped, tag = 'output window, operand 0, single buffered']
    %10 = vsyncpa [#allocation3], 0
    %11 = vsyncpa [#allocation6], 0
    %12 = vsyncpa [#allocation4], 0
    // Predicated region
    $region2: #{tpu_custom_call.1} parent=1 // pred_check
      _
    $region3: #{tpu_custom_call.1} parent=1 // pred_check_branch
      %14 = sbr.rel (0) target = $region5
    $region4: #{tpu_custom_call.1} parent=1 // pred_region
      %s16 = ssub.s32 32, 32
      %17 = vsyncadd [#allocation3], %s16
      %s19 = sshll.u32 [#allocation2], 4
      %s20 = int_to_ptr.vmem [resolvable:$true] %s19
      %22 = dma.hbm_to_vmem [thread:$0]  %s0, 32, %s20, [#allocation3]
    $region5: #{tpu_custom_call.1} parent=1 // pred_fallthru
      _
    // Predicated region
    $region6: #{tpu_custom_call.1} parent=1 // pred_check
      _
    $region7: #{tpu_custom_call.1} parent=1 // pred_check_branch
      %24 = sbr.rel (0) target = $region9
    $region8: #{tpu_custom_call.1} parent=1 // pred_region
      %s26 = ssub.s32 256, 256
      %27 = vsyncadd [#allocation6], %s26
      %s28 = sshll.u32 [#allocation5], 4
      %s29 = int_to_ptr.vmem [resolvable:$true] %s28
      %34 = dma.hbm_to_vmem [thread:$0]  %s1, 256, %s29, [#allocation6], 128, 128, 8
    $region9: #{tpu_custom_call.1} parent=1 // pred_fallthru
      _
    // Predicated region
    $region10: #{tpu_custom_call.1} parent=1 // pred_check
      _
    $region11: #{tpu_custom_call.1} parent=1 // pred_check_branch
      %36 = sbr.rel (0) target = $region13
    $region12: #{tpu_custom_call.1} parent=1 // pred_region
      _
    $region13: #{tpu_custom_call.1} parent=1 // pred_fallthru
      _
    // Predicated region
    $region14: #{tpu_custom_call.1} parent=1 // pred_check
      _
    $region15: #{tpu_custom_call.1} parent=1 // pred_check_branch
      %38 = sbr.rel (0) target = $region17
    $region16: #{tpu_custom_call.1} parent=1 // pred_region
      %s40 = ssub.s32 4096, 4096
      %41 = vsyncadd [#allocation6], %s40
      %s42 = sshll.u32 [#allocation7], 4
      %s43 = int_to_ptr.vmem [resolvable:$true] %s42
      %48 = dma.hbm_to_vmem [thread:$0]  %s3, 4096, %s43, [#allocation6], 128, 128, 8
    $region17: #{tpu_custom_call.1} parent=1 // pred_fallthru
      _
    // Predicated region
    $region18: #{tpu_custom_call.1} parent=1 // pred_check
      _
    $region19: #{tpu_custom_call.1} parent=1 // pred_check_branch
      %50 = sbr.rel (0) target = $region21
    $region20: #{tpu_custom_call.1} parent=1 // pred_region
      _
    $region21: #{tpu_custom_call.1} parent=1 // pred_fallthru
      _
    // Predicated region
    $region22: #{tpu_custom_call.1} parent=1 // pred_check
      _
    $region23: #{tpu_custom_call.1} parent=1 // pred_check_branch
      %52 = sbr.rel (0) target = $region25
    $region24: #{tpu_custom_call.1} parent=1 // pred_region
      %53 = dma.done [#allocation3], 32
    $region25: #{tpu_custom_call.1} parent=1 // pred_fallthru
      _
    // Predicated region
    $region26: #{tpu_custom_call.1} parent=1 // pred_check
      _
    $region27: #{tpu_custom_call.1} parent=1 // pred_check_branch
      %55 = sbr.rel (0) target = $region29
    $region28: #{tpu_custom_call.1} parent=1 // pred_region
      %56 = dma.done [#allocation6], 256
    $region29: #{tpu_custom_call.1} parent=1 // pred_fallthru
      _
    // Predicated region
    $region30: #{tpu_custom_call.1} parent=1 // pred_check
      _
    $region31: #{tpu_custom_call.1} parent=1 // pred_check_branch
      %58 = sbr.rel (0) target = $region33
    $region32: #{tpu_custom_call.1} parent=1 // pred_region
      %59 = dma.done [#allocation6], 4096
    $region33: #{tpu_custom_call.1} parent=1 // pred_fallthru
      _
    %v61 = vld [vmem:[#allocation2] sm:$0x3]
    %v62 = vpack.c.bf16 %v61, %v61
    %v63 = vld [vmem:[#allocation5] sm:$0xff]
    %v64 = vld [vmem:[#allocation5 + $0x8] sm:$0xff]
    %v65 = vld [vmem:[%s2] sm:$0x3]
    %v67 = vlaneseq
    %v68 = vshrl.u32 %v67, 7
    %v69 = vsub.s32 0, %v68
    %v70 = vrot.slane %v65, %v69
    %v71 = vlaneseq
    %v72 = vshrl.u32 %v71, 7
    %v73 = vsub.s32 1, %v72
    %v74 = vrot.slane %v65, %v73
    %v79 = vunpack.c.l.b16 %v63
    %v80 = vunpack.c.h.b16 %v63
    %v81 = vunpack.c.l.b16 %v64
    %v82 = vunpack.c.h.b16 %v64
    %v83 = vpack.c.b16 %v81, %v79
    %v84 = vpack.c.b16 %v82, %v80
    %vm87 = vcmask 130048
    %v89 = vsel %vm87, %v62, 0
    %91 = vmatprep.subr.bf16.mxu0 0
    %92 = vmatpush1.bf16.msra.mxu0 0
    %93 = vmatprep.subr.bf16.mxu0 0
    %94 = vmatpush1.bf16.msra.mxu0 0
    %95 = vmatprep.subr.bf16.mxu0 0
    %96 = vmatpush1.bf16.msra.mxu0 0
    %97 = vmatprep.subr.bf16.mxu0 0
    %98 = vmatpush1.bf16.msra.mxu0 0
    %99 = vmatprep.subr.bf16.mxu0 0
    %100 = vmatpush1.bf16.msra.mxu0 0
    %101 = vmatprep.subr.bf16.mxu0 0
    %102 = vmatpush1.bf16.msra.mxu0 0
    %103 = vmatprep.subr.bf16.mxu0 0
    %104 = vmatpush1.bf16.msra.mxu0 0
    %105 = vmatprep.subr.bf16.mxu0 %v84
    %106 = vmatpush1.bf16.msra.mxu0 %v83
    %107 = vmatprep.subr.bf16.mxu0 0
    %108 = vmatpush2.bf16.msra.mxu0 0
    %109 = vmatprep.subr.bf16.mxu0 0
    %110 = vmatpush2.bf16.msra.mxu0 0
    %111 = vmatprep.subr.bf16.mxu0 0
    %112 = vmatpush2.bf16.msra.mxu0 0
    %113 = vmatprep.subr.bf16.mxu0 0
    %114 = vmatpush2.bf16.msra.mxu0 0
    %115 = vmatprep.subr.bf16.mxu0 0
    %116 = vmatpush2.bf16.msra.mxu0 0
    %117 = vmatprep.subr.bf16.mxu0 0
    %118 = vmatpush2.bf16.msra.mxu0 0
    %119 = vmatprep.subr.bf16.mxu0 0
    %120 = vmatpush2.bf16.msra.mxu0 0
    %121 = vmatprep.subr.bf16.mxu0 0
    %122 = vmatpush2.bf16.msra.mxu0 0
    %123 = vmatprep.mubr.bf16.mxu0 0
    %124 = vmatmul.mubr.bf16.gmra.mxu0 %v89
    %v125 = vpop.f32.mrf.mxu0
    %v126 = vadd.f32 %v70, %v125
    %v127 = vpop.f32.mrf.mxu0
    %v128 = vadd.f32 %v74, %v127
    %v129 = vpop.f32.mrf.mxu0
    %v130 = vpop.f32.mrf.mxu0
    %131 = vdwg.mxu0
    %v132 = vmax.f32 %v126, 0.0
    %v133 = vmax.f32 %v128, 0.0
    %v134 = vpack.c.bf16 %v132, %v132
    %v135 = vpack.c.bf16 %v133, %v133
    %v136 = vld [vmem:[#allocation7] sm:$0xff]
    %v137 = vld [vmem:[#allocation7 + $0x8] sm:$0xff]
    %v138 = vld [vmem:[#allocation7 + $0x10] sm:$0xff]
    %v139 = vld [vmem:[#allocation7 + $0x18] sm:$0xff]
    %v140 = vld [vmem:[#allocation7 + $0x20] sm:$0xff]
    %v141 = vld [vmem:[#allocation7 + $0x28] sm:$0xff]
    %v142 = vld [vmem:[#allocation7 + $0x30] sm:$0xff]
    %v143 = vld [vmem:[#allocation7 + $0x38] sm:$0xff]
    %v144 = vld [vmem:[#allocation7 + $0x40] sm:$0xff]
    %v145 = vld [vmem:[#allocation7 + $0x48] sm:$0xff]
    %v146 = vld [vmem:[#allocation7 + $0x50] sm:$0xff]
    %v147 = vld [vmem:[#allocation7 + $0x58] sm:$0xff]
    %v148 = vld [vmem:[#allocation7 + $0x60] sm:$0xff]
    %v149 = vld [vmem:[#allocation7 + $0x68] sm:$0xff]
    %v150 = vld [vmem:[#allocation7 + $0x70] sm:$0xff]
    %v151 = vld [vmem:[#allocation7 + $0x78] sm:$0xff]
    %v152 = vld [vmem:[#allocation7 + $0x80] sm:$0xff]
    %v153 = vld [vmem:[#allocation7 + $0x88] sm:$0xff]
    %v154 = vld [vmem:[#allocation7 + $0x90] sm:$0xff]
    %v155 = vld [vmem:[#allocation7 + $0x98] sm:$0xff]
    %v156 = vld [vmem:[#allocation7 + $0xa0] sm:$0xff]
    %v157 = vld [vmem:[#allocation7 + $0xa8] sm:$0xff]
    %v158 = vld [vmem:[#allocation7 + $0xb0] sm:$0xff]
    %v159 = vld [vmem:[#allocation7 + $0xb8] sm:$0xff]
    %v160 = vld [vmem:[#allocation7 + $0xc0] sm:$0xff]
    %v161 = vld [vmem:[#allocation7 + $0xc8] sm:$0xff]
    %v162 = vld [vmem:[#allocation7 + $0xd0] sm:$0xff]
    %v163 = vld [vmem:[#allocation7 + $0xd8] sm:$0xff]
    %v164 = vld [vmem:[#allocation7 + $0xe0] sm:$0xff]
    %v165 = vld [vmem:[#allocation7 + $0xe8] sm:$0xff]
    %v166 = vld [vmem:[#allocation7 + $0xf0] sm:$0xff]
    %v167 = vld [vmem:[#allocation7 + $0xf8] sm:$0xff]
    %v168 = vld [vmem:[%s4] sm:$0x3]
    %v170 = vlaneseq
    %v171 = vshrl.u32 %v170, 7
    %v172 = vsub.s32 0, %v171
    %v173 = vrot.slane %v168, %v172
    %v174 = vlaneseq
    %v175 = vshrl.u32 %v174, 7
    %v176 = vsub.s32 1, %v175
    %v177 = vrot.slane %v168, %v176
    %v212 = vunpack.c.l.b16 %v136
    %v213 = vunpack.c.h.b16 %v136
    %v214 = vunpack.c.l.b16 %v137
    %v215 = vunpack.c.h.b16 %v137
    %v216 = vunpack.c.l.b16 %v138
    %v217 = vunpack.c.h.b16 %v138
    %v218 = vunpack.c.l.b16 %v139
    %v219 = vunpack.c.h.b16 %v139
    %v220 = vunpack.c.l.b16 %v140
    %v221 = vunpack.c.h.b16 %v140
    %v222 = vunpack.c.l.b16 %v141
    %v223 = vunpack.c.h.b16 %v141
    %v224 = vunpack.c.l.b16 %v142
    %v225 = vunpack.c.h.b16 %v142
    %v226 = vunpack.c.l.b16 %v143
    %v227 = vunpack.c.h.b16 %v143
    %v228 = vunpack.c.l.b16 %v144
    %v229 = vunpack.c.h.b16 %v144
    %v230 = vunpack.c.l.b16 %v145
    %v231 = vunpack.c.h.b16 %v145
    %v232 = vunpack.c.l.b16 %v146
    %v233 = vunpack.c.h.b16 %v146
    %v234 = vunpack.c.l.b16 %v147
    %v235 = vunpack.c.h.b16 %v147
    %v236 = vunpack.c.l.b16 %v148
    %v237 = vunpack.c.h.b16 %v148
    %v238 = vunpack.c.l.b16 %v149
    %v239 = vunpack.c.h.b16 %v149
    %v240 = vunpack.c.l.b16 %v150
    %v241 = vunpack.c.h.b16 %v150
    %v242 = vunpack.c.l.b16 %v151
    %v243 = vunpack.c.h.b16 %v151
    %v244 = vunpack.c.l.b16 %v152
    %v245 = vunpack.c.h.b16 %v152
    %v246 = vunpack.c.l.b16 %v153
    %v247 = vunpack.c.h.b16 %v153
    %v248 = vunpack.c.l.b16 %v154
    %v249 = vunpack.c.h.b16 %v154
    %v250 = vunpack.c.l.b16 %v155
    %v251 = vunpack.c.h.b16 %v155
    %v252 = vunpack.c.l.b16 %v156
    %v253 = vunpack.c.h.b16 %v156
    %v254 = vunpack.c.l.b16 %v157
    %v255 = vunpack.c.h.b16 %v157
    %v256 = vunpack.c.l.b16 %v158
    %v257 = vunpack.c.h.b16 %v158
    %v258 = vunpack.c.l.b16 %v159
    %v259 = vunpack.c.h.b16 %v159
    %v260 = vunpack.c.l.b16 %v160
    %v261 = vunpack.c.h.b16 %v160
    %v262 = vunpack.c.l.b16 %v161
    %v263 = vunpack.c.h.b16 %v161
    %v264 = vunpack.c.l.b16 %v162
    %v265 = vunpack.c.h.b16 %v162
    %v266 = vunpack.c.l.b16 %v163
    %v267 = vunpack.c.h.b16 %v163
    %v268 = vunpack.c.l.b16 %v164
    %v269 = vunpack.c.h.b16 %v164
    %v270 = vunpack.c.l.b16 %v165
    %v271 = vunpack.c.h.b16 %v165
    %v272 = vunpack.c.l.b16 %v166
    %v273 = vunpack.c.h.b16 %v166
    %v274 = vunpack.c.l.b16 %v167
    %v275 = vunpack.c.h.b16 %v167
    %v276 = vpack.c.b16 %v214, %v212
    %v277 = vpack.c.b16 %v215, %v213
    %v278 = vpack.c.b16 %v218, %v216
    %v279 = vpack.c.b16 %v219, %v217
    %v280 = vpack.c.b16 %v222, %v220
    %v281 = vpack.c.b16 %v223, %v221
    %v282 = vpack.c.b16 %v226, %v224
    %v283 = vpack.c.b16 %v227, %v225
    %v284 = vpack.c.b16 %v230, %v228
    %v285 = vpack.c.b16 %v231, %v229
    %v286 = vpack.c.b16 %v234, %v232
    %v287 = vpack.c.b16 %v235, %v233
    %v288 = vpack.c.b16 %v238, %v236
    %v289 = vpack.c.b16 %v239, %v237
    %v290 = vpack.c.b16 %v242, %v240
    %v291 = vpack.c.b16 %v243, %v241
    %v292 = vpack.c.b16 %v246, %v244
    %v293 = vpack.c.b16 %v247, %v245
    %v294 = vpack.c.b16 %v250, %v248
    %v295 = vpack.c.b16 %v251, %v249
    %v296 = vpack.c.b16 %v254, %v252
    %v297 = vpack.c.b16 %v255, %v253
    %v298 = vpack.c.b16 %v258, %v256
    %v299 = vpack.c.b16 %v259, %v257
    %v300 = vpack.c.b16 %v262, %v260
    %v301 = vpack.c.b16 %v263, %v261
    %v302 = vpack.c.b16 %v266, %v264
    %v303 = vpack.c.b16 %v267, %v265
    %v304 = vpack.c.b16 %v270, %v268
    %v305 = vpack.c.b16 %v271, %v269
    %v306 = vpack.c.b16 %v274, %v272
    %v307 = vpack.c.b16 %v275, %v273
    %340 = vmatprep.subr.bf16.mxu0 %v291
    %341 = vmatpush1.bf16.msra.mxu0 %v290
    %342 = vmatprep.subr.bf16.mxu0 %v289
    %343 = vmatpush1.bf16.msra.mxu0 %v288
    %344 = vmatprep.subr.bf16.mxu0 %v287
    %345 = vmatpush1.bf16.msra.mxu0 %v286
    %346 = vmatprep.subr.bf16.mxu0 %v285
    %347 = vmatpush1.bf16.msra.mxu0 %v284
    %348 = vmatprep.subr.bf16.mxu0 %v283
    %349 = vmatpush1.bf16.msra.mxu0 %v282
    %350 = vmatprep.subr.bf16.mxu0 %v281
    %351 = vmatpush1.bf16.msra.mxu0 %v280
    %352 = vmatprep.subr.bf16.mxu0 %v279
    %353 = vmatpush1.bf16.msra.mxu0 %v278
    %354 = vmatprep.subr.bf16.mxu0 %v277
    %355 = vmatpush1.bf16.msra.mxu0 %v276
    %356 = vmatprep.subr.bf16.mxu0 %v307
    %357 = vmatpush2.bf16.msra.mxu0 %v306
    %358 = vmatprep.subr.bf16.mxu0 %v305
    %359 = vmatpush2.bf16.msra.mxu0 %v304
    %360 = vmatprep.subr.bf16.mxu0 %v303
    %361 = vmatpush2.bf16.msra.mxu0 %v302
    %362 = vmatprep.subr.bf16.mxu0 %v301
    %363 = vmatpush2.bf16.msra.mxu0 %v300
    %364 = vmatprep.subr.bf16.mxu0 %v299
    %365 = vmatpush2.bf16.msra.mxu0 %v298
    %366 = vmatprep.subr.bf16.mxu0 %v297
    %367 = vmatpush2.bf16.msra.mxu0 %v296
    %368 = vmatprep.subr.bf16.mxu0 %v295
    %369 = vmatpush2.bf16.msra.mxu0 %v294
    %370 = vmatprep.subr.bf16.mxu0 %v293
    %371 = vmatpush2.bf16.msra.mxu0 %v292
    %372 = vmatprep.mubr.bf16.mxu0 %v135
    %373 = vmatmul.mubr.bf16.gmra.mxu0 %v134
    %v374 = vpop.f32.mrf.mxu0
    %v375 = vadd.f32 %v173, %v374
    %v376 = vpop.f32.mrf.mxu0
    %v377 = vadd.f32 %v177, %v376
    %v378 = vpop.f32.mrf.mxu0
    %v379 = vpop.f32.mrf.mxu0
    %380 = vdwg.mxu0
    %v381 = vmax.f32 %v375, 0.0
    %v382 = vmax.f32 %v377, 0.0
    %vm383 = vcmask 1041408
    %v384 = vsel %vm383, %v381, -inf
    %v385 = vsel %vm383, %v382, -inf
    %v386 = vmax.f32 %v384, %v385
    %387 = vmax.xlane.f32.xlu0 %v386
    %v388 = vpop.xlane.xlu0 %387
    %v389 = vsub.f32 %v381, %v388
    %v390 = vsub.f32 %v382, %v388
    %v391 = vmul.f32 %v389, 1.442695
    %v392 = vpow.pop %v391
    %v393 = vmul.f32 %v390, 1.442695
    %v394 = vpow.pop %v393
    %v395 = vsel %vm383, %v392, 0.0
    %v396 = vsel %vm383, %v394, 0.0
    %v397 = vadd.f32 %v395, %v396
    %398 = vadd.xlane.f32.xlu0 %v397
    %v399 = vpop.xlane.xlu0 %398
    %v400 = vrcp.pop %v399
    %v401 = vmul.f32 %v392, %v400
    %v402 = vmul.f32 %v394, %v400
    %v403 = vpack.c.bf16 %v401, %v401
    %v404 = vpack.c.bf16 %v402, %v402
    %v407 = vcombine.low %v403, %v404
    %v409 = vunpack.c.l.s4 1966171168
    %v410 = vunpack.c.0.s8 %v409
    %v411 = vlaneseq
    %v412 = vshrl.u32 %v411, 7
    %v413 = vsub.s32 %v410, %v412
    %v414 = vrot.slane %v407, %v413
    %v416 = vunpack.c.l.s4 1966171168
    %v417 = vunpack.c.0.s8 %v416
    %v418 = vlaneseq
    %v419 = vshrl.u32 %v418, 7
    %v420 = vsub.s32 %v417, %v419
    %v421 = vrot.slane %v414, %v420
    %423 = vst [vmem:[#allocation8] sm:$0x3] %v421
    // Predicated region
    $region34: #{tpu_custom_call.1} parent=1 // pred_check
      _
    $region35: #{tpu_custom_call.1} parent=1 // pred_check_branch
      %425 = sbr.rel (0) target = $region37
    $region36: #{tpu_custom_call.1} parent=1 // pred_region
      %s427 = ssub.s32 32, 32
      %428 = vsyncadd [#allocation4], %s427
      %s430 = sshll.u32 [#allocation8], 4
      %s431 = int_to_ptr.vmem [resolvable:$true] %s430
      %433 = dma.vmem_to_hbm [thread:$0]  %s431, 32, %s5, [#allocation4]
    $region37: #{tpu_custom_call.1} parent=1 // pred_fallthru
      _
    // Predicated region
    $region38: #{tpu_custom_call.1} parent=1 // pred_check
      _
    $region39: #{tpu_custom_call.1} parent=1 // pred_check_branch
      %435 = sbr.rel (0) target = $region41
    $region40: #{tpu_custom_call.1} parent=1 // pred_region
      %436 = dma.done [#allocation4], 32
    $region41: #{tpu_custom_call.1} parent=1 // pred_fallthru
      _
    %437 = vsyncpa [#allocation3], 1
    %438 = vsyncpa [#allocation6], 1
    %439 = vsyncpa [#allocation4], 1

</llo_original>
